<compile_context>
chip_gen: v7x
topology: tpu7x:2x2x1
jax: 0.10.0
libtpu: 0.0.40
codegen_flags: <defaults>
</compile_context>

<pallas_src>
import jax
import jax.numpy as jnp
from jax import lax
from jax.experimental import pallas as pl
from jax.experimental.pallas import tpu as pltpu

KH, KW = 8, 22          # Conv2d kernel_size == stride
K = KH * KW             # 176
BN_EPS = 1e-5
TP_MAX = 2048           # lane-tile over P; ~1.4 MiB/buffer -> fits all gens


def _conv_patches_kernel(w_ref, p_ref, o_ref):
    # w_ref: (8, K) f32   conv weight replicated over 8 sublanes
    # p_ref: (K, TP) f32  transposed im2col patch tile (K on sublanes)
    # o_ref: (8, TP) f32  lane-dense conv output tile (row 0 is the result)
    o_ref[...] = jnp.dot(w_ref[...], p_ref[...],
                         preferred_element_type=jnp.float32)


def _bn_relu_kernel(st_ref, c_ref, o_ref):
    # st_ref: (2,) f32 in SMEM -> [scale, shift] (folded BatchNorm affine)
    # c_ref / o_ref: (8, TP) f32 lane-dense tiles
    scale = st_ref[0]
    shift = st_ref[1]
    o_ref[...] = jnp.maximum(c_ref[...] * scale + shift, 0.0)


def cnn3_block_forward(x, conv_w, conv_b, bn_gamma, bn_beta, *, tp_max=TP_MAX):
    """x: (N, 1, H, W) float32, NCHW (same as the PyTorch module)."""
    del conv_b  # cancels exactly under training-mode BatchNorm (mean subtract)

    n, c, h, w = x.shape
    assert c == 1, "cnn3_block's conv is hard-coded to 1 input channel"
    ho, wo = h // KH, w // KW
    p = n * ho * wo

    # --- im2col produced directly in transposed (K, P) layout --------------
    xc = x[:, 0, : ho * KH, : wo * KW].astype(jnp.float32)
    pt = (xc.reshape(n, ho, KH, wo, KW)
            .transpose(2, 4, 0, 1, 3)          # (KH, KW, n, ho, wo)
            .reshape(K, p))                    # (K, P)

    # --- tile P on the lane axis --------------------------------------------
    p128 = ((p + 127) // 128) * 128
    tp = min(tp_max, p128)
    p_pad = ((p128 + tp - 1) // tp) * tp
    if p_pad != p:
        pt = jnp.pad(pt, ((0, 0), (0, p_pad - p)))
    num_tiles = p_pad // tp

    w8 = jnp.tile(conv_w.reshape(1, K).astype(jnp.float32), (8, 1))  # (8, K)

    cparams = pltpu.CompilerParams(
        dimension_semantics=("parallel",),        # lets v7x split P over cores
        vmem_limit_bytes=32 * 1024 * 1024,        # explicit; well under v7x 64MiB
    )

    # --- pass 1: conv as a tiled, pipelined matmul ---------------------------
    conv8 = pl.pallas_call(
        _conv_patches_kernel,
        out_shape=jax.ShapeDtypeStruct((8, p_pad), jnp.float32),
        grid=(num_tiles,),
        in_specs=[
            pl.BlockSpec((8, K), lambda i: (0, 0)),
            pl.BlockSpec((K, tp), lambda i: (0, i)),
        ],
        out_specs=pl.BlockSpec((8, tp), lambda i: (0, i)),
        compiler_params=cparams,
    )(w8, pt)

    # --- BatchNorm batch statistics (tiny scalar epilogue in JAX) -----------
    conv = conv8[0, :p]
    mean = jnp.mean(conv)
    var = jnp.mean(jnp.square(conv - mean))       # biased var (training mode)
    inv = lax.rsqrt(var + BN_EPS)
    scale = bn_gamma.reshape(()) * inv
    shift = bn_beta.reshape(()) - scale * mean
    st = jnp.stack([scale, shift]).astype(jnp.float32)   # (2,)

    # --- pass 2: folded BN affine + ReLU, lane-dense, scalars via SMEM ------
    y8 = pl.pallas_call(
        _bn_relu_kernel,
        out_shape=jax.ShapeDtypeStruct((8, p_pad), jnp.float32),
        grid=(num_tiles,),
        in_specs=[
            pl.BlockSpec(memory_space=pltpu.MemorySpace.SMEM),
            pl.BlockSpec((8, tp), lambda i: (0, i)),
        ],
        out_specs=pl.BlockSpec((8, tp), lambda i: (0, i)),
        compiler_params=cparams,
    )(st, conv8)

    # back to NCHW: (N, 1, Ho, Wo)
    return y8[0, :p].reshape(n, ho, wo)[:, None, :, :]


def _reference_forward(x, conv_w, conv_b, bn_gamma, bn_beta):
    """Pure-JAX reference replicating the PyTorch forward (training-mode BN,
    including the conv bias, to verify that dropping it in the kernel path is
    exactly equivalent)."""
    n, _, h, w = x.shape
    ho, wo = h // KH, w // KW
    patches = x[:, 0, : ho * KH, : wo * KW].reshape(n, ho, KH, wo, KW)
    patches = patches.transpose(0, 1, 3, 2, 4).reshape(n * ho * wo, K)
    conv = patches @ conv_w.reshape(-1, 1) + conv_b.reshape(1, 1)
    mean = jnp.mean(conv)
    var = jnp.mean((conv - mean) ** 2)
    y = bn_gamma * (conv - mean) / jnp.sqrt(var + BN_EPS) + bn_beta
    y = jnp.maximum(y, 0.0)
    return y.reshape(n, ho, wo, 1).transpose(0, 3, 1, 2)


if __name__ == "__main__":
    key = jax.random.PRNGKey(0)
    k_x, k_w, k_b, k_x2 = jax.random.split(key, 4)

    # Deterministic parameter init (shapes from the module's __init__).
    fan_in = 1 * KH * KW
    bound = 1.0 / (fan_in ** 0.5)
    conv_w = jax.random.uniform(k_w, (1, 1, KH, KW), jnp.float32, -bound, bound)
    conv_b = jax.random.uniform(k_b, (1,), jnp.float32, -bound, bound)
    bn_gamma = jnp.ones((1,), jnp.float32)   # BatchNorm2d default weight
    bn_beta = jnp.zeros((1,), jnp.float32)   # BatchNorm2d default bias

    # --- test 1: small shape, single tile (exercises lane padding P=8->128) -
    N, C, H, W = 2, 1, 16, 44                # conv output (2, 1, 2, 2)
    x = jax.random.normal(k_x, (N, C, H, W), dtype=jnp.float32)
    out = jax.block_until_ready(
        cnn3_block_forward(x, conv_w, conv_b, bn_gamma, bn_beta))
    ref = _reference_forward(x, conv_w, conv_b, bn_gamma, bn_beta)
    assert out.shape == (N, 1, H // KH, W // KW), out.shape
    assert jnp.allclose(out, ref, atol=1e-5, rtol=1e-5)

    # --- test 2: larger P with a small tile to exercise the multi-tile,
    #             pipelined grid path (P = 256, TP = 128 -> grid = (2,)) ------
    N2, H2, W2 = 4, 64, 176
    x2 = jax.random.normal(k_x2, (N2, 1, H2, W2), dtype=jnp.float32)
    out2 = jax.block_until_ready(
        cnn3_block_forward(x2, conv_w, conv_b, bn_gamma, bn_beta, tp_max=128))
    ref2 = _reference_forward(x2, conv_w, conv_b, bn_gamma, bn_beta)
    assert out2.shape == (N2, 1, H2 // KH, W2 // KW), out2.shape
    assert jnp.allclose(out2, ref2, atol=1e-5, rtol=1e-5)

    print("KERNEL_OK")
</pallas_src>

<mosaic_0001>
module attributes {stable_mosaic.version = 11 : i64} {
  func.func @_conv_patches_kernel(%arg0: i32, %arg1: memref<8x176xf32, #tpu.memory_space<vmem>>, %arg2: memref<176x128xf32, #tpu.memory_space<vmem>>, %arg3: memref<8x128xf32, #tpu.memory_space<vmem>>) attributes {dimension_semantics = [#tpu.dimension_semantics<parallel>], iteration_bounds = array<i64: 1>, scalar_prefetch = 0 : i64, scratch_operands = 0 : i64, tpu.core_type = #tpu.core_type<tc>, window_params = [{pipeline_mode = #tpu.pipeline_mode<synchronous>, transform_indices = @transform_0, window_bounds = array<i64: 8, 176>}, {transform_indices = @transform_1, window_bounds = array<i64: 176, 128>}, {transform_indices = @transform_2, window_bounds = array<i64: 8, 128>}]} {
    %c0 = arith.constant 0 : index
    %c0_0 = arith.constant 0 : index
    %0 = vector.load %arg1[%c0, %c0_0] : memref<8x176xf32, #tpu.memory_space<vmem>>, vector<8x176xf32>
    %c0_1 = arith.constant 0 : index
    %c0_2 = arith.constant 0 : index
    %1 = vector.load %arg2[%c0_1, %c0_2] : memref<176x128xf32, #tpu.memory_space<vmem>>, vector<176x128xf32>
    %cst = arith.constant dense<0.000000e+00> : vector<8x128xf32>
    %2 = tpu.matmul %0, %1, %cst {dimension_numbers = #tpu.dot_dimension_numbers<[1], [0], [0], [1], [0, 0, 1, 1], [], []>} : vector<8x176xf32>, vector<176x128xf32>, vector<8x128xf32> -> vector<8x128xf32>
    %c0_3 = arith.constant 0 : index
    %c0_4 = arith.constant 0 : index
    %3 = vector.load %arg3[%c0_3, %c0_4] : memref<8x128xf32, #tpu.memory_space<vmem>>, vector<8x128xf32>
    tpu.vector_store %arg3[%c0_3, %c0_4], %2 {strides = array<i32>} : memref<8x128xf32, #tpu.memory_space<vmem>>, vector<8x128xf32>,
    return
  }
  func.func @transform_0(%arg0: i32) -> (i32, i32) {
    %c0_i32 = arith.constant 0 : i32
    %c0_i32_0 = arith.constant 0 : i32
    %c0_i32_1 = arith.constant 0 : i32
    return %c0_i32, %c0_i32_0 : i32, i32
  }
  func.func @transform_1(%arg0: i32) -> (i32, i32) {
    %c0_i32 = arith.constant 0 : i32
    %c0_i32_0 = arith.constant 0 : i32
    return %c0_i32, %arg0 : i32, i32
  }
  func.func @transform_2(%arg0: i32) -> (i32, i32) {
    %c0_i32 = arith.constant 0 : i32
    %c0_i32_0 = arith.constant 0 : i32
    return %c0_i32, %arg0 : i32, i32
  }
}

</mosaic_0001>

<llo_original>
// kernel: tpu_custom_call.1
$region0: #{tpu_custom_call.1}
  #allocation0 [shape = 'u32[]', space=smem, size = 0x4, offset = 0x4, fixed_abs, tag = 'smem constant byte address 0x4 - core index']
  #allocation1 [shape = 'u32[144,128]{1,0:T(1,128)}', space=vmem, size = 0x12000, scoped, tag = 'internal scratch']
  %s0 = inlined_call_operand.hbm [shape: f32[8,176], index: 0, kind: input, shape index: {}]
  %s1 = inlined_call_operand.hbm [shape: f32[176,128], index: 1, kind: input, shape index: {}]
  %s2 = inlined_call_operand.hbm [shape: f32[8,128], index: 2, kind: output, shape index: {}]
  %s3 = sld [smem:[#allocation0]]
  $region26: #{tpu_custom_call.1} parent=0
    _
  %s5 = ssub.s32 1, %s3
  %s6 = scalar_select 0, %s5, %s3
  $region1: #{tpu_custom_call.1} parent=0
    #allocation2 [shape = 'u8[8192]{0}', space=vmem, size = 0x2000, scoped, tag = 'input window, operand 0, single buffered']
    #allocation3 [shape = 's32[1]{0}', space=sflag, size = 0x4, scoped, tag = 'scoped memory for tpu_custom_call.1']
    #allocation4 [shape = 's32[1]{0}', space=sflag, size = 0x4, scoped, tag = 'scoped memory for tpu_custom_call.1']
    #allocation5 [shape = 'u8[90112]{0}', space=vmem, size = 0x16000, scoped, tag = 'input window, operand 1, single buffered']
    #allocation6 [shape = 's32[1]{0}', space=sflag, size = 0x4, scoped, tag = 'scoped memory for tpu_custom_call.1']
    #allocation7 [shape = 'u8[4096]{0}', space=vmem, size = 0x1000, scoped, tag = 'output window, operand 0, single buffered']
    %7 = vsyncpa [#allocation3], 0
    %8 = vsyncpa [#allocation6], 0
    %9 = vsyncpa [#allocation4], 0
    // Predicated region
    $region2: #{tpu_custom_call.1} parent=1 // pred_check
      _
    $region3: #{tpu_custom_call.1} parent=1 // pred_check_branch
      %11 = sbr.rel (0) target = $region5
    $region4: #{tpu_custom_call.1} parent=1 // pred_region
      %s13 = ssub.s32 256, 256
      %14 = vsyncadd [#allocation3], %s13
      %s16 = sshll.u32 [#allocation2], 4
      %s17 = int_to_ptr.vmem [resolvable:$true] %s16
      %19 = dma.hbm_to_vmem [thread:$0]  %s0, 256, %s17, [#allocation3]
    $region5: #{tpu_custom_call.1} parent=1 // pred_fallthru
      _
    // Predicated region
    $region6: #{tpu_custom_call.1} parent=1 // pred_check
      _
    $region7: #{tpu_custom_call.1} parent=1 // pred_check_branch
      %21 = sbr.rel (0) target = $region9
    $region8: #{tpu_custom_call.1} parent=1 // pred_region
      %s23 = ssub.s32 2816, 2816
      %24 = vsyncadd [#allocation6], %s23
      %s25 = sshll.u32 [#allocation5], 4
      %s26 = int_to_ptr.vmem [resolvable:$true] %s25
      %31 = dma.hbm_to_vmem [thread:$0]  %s1, 2816, %s26, [#allocation6], 128, 128, 8
    $region9: #{tpu_custom_call.1} parent=1 // pred_fallthru
      _
    // Predicated region
    $region10: #{tpu_custom_call.1} parent=1 // pred_check
      _
    $region11: #{tpu_custom_call.1} parent=1 // pred_check_branch
      %33 = sbr.rel (0) target = $region13
    $region12: #{tpu_custom_call.1} parent=1 // pred_region
      %34 = dma.done [#allocation3], 256
    $region13: #{tpu_custom_call.1} parent=1 // pred_fallthru
      _
    // Predicated region
    $region14: #{tpu_custom_call.1} parent=1 // pred_check
      _
    $region15: #{tpu_custom_call.1} parent=1 // pred_check_branch
      %36 = sbr.rel (0) target = $region17
    $region16: #{tpu_custom_call.1} parent=1 // pred_region
      %37 = dma.done [#allocation6], 2816
    $region17: #{tpu_custom_call.1} parent=1 // pred_fallthru
      _
    %v38 = vld [vmem:[#allocation2] sm:$0xff]
    %v39 = vld [vmem:[#allocation2 + $0x8] sm:$0xff]
    %v40 = vld [vmem:[#allocation5] sm:$0xff]
    %v41 = vld [vmem:[#allocation5 + $0x8] sm:$0xff]
    %v42 = vld [vmem:[#allocation5 + $0x10] sm:$0xff]
    %v43 = vld [vmem:[#allocation5 + $0x18] sm:$0xff]
    %v44 = vld [vmem:[#allocation5 + $0x20] sm:$0xff]
    %v45 = vld [vmem:[#allocation5 + $0x28] sm:$0xff]
    %v46 = vld [vmem:[#allocation5 + $0x30] sm:$0xff]
    %v47 = vld [vmem:[#allocation5 + $0x38] sm:$0xff]
    %v48 = vld [vmem:[#allocation5 + $0x40] sm:$0xff]
    %v49 = vld [vmem:[#allocation5 + $0x48] sm:$0xff]
    %v50 = vld [vmem:[#allocation5 + $0x50] sm:$0xff]
    %v51 = vld [vmem:[#allocation5 + $0x58] sm:$0xff]
    %v52 = vld [vmem:[#allocation5 + $0x60] sm:$0xff]
    %v53 = vld [vmem:[#allocation5 + $0x68] sm:$0xff]
    %v54 = vld [vmem:[#allocation5 + $0x70] sm:$0xff]
    %v55 = vld [vmem:[#allocation5 + $0x78] sm:$0xff]
    %v56 = vld [vmem:[#allocation5 + $0x80] sm:$0xff]
    %v57 = vld [vmem:[#allocation5 + $0x88] sm:$0xff]
    %v58 = vld [vmem:[#allocation5 + $0x90] sm:$0xff]
    %v59 = vld [vmem:[#allocation5 + $0x98] sm:$0xff]
    %v60 = vld [vmem:[#allocation5 + $0xa0] sm:$0xff]
    %v61 = vld [vmem:[#allocation5 + $0xa8] sm:$0xff]
    %vm62 = vcmask 392192
    %v64 = vsel %vm62, %v39, 0
    %66 = vmatprep.subr.mxu0 0.0
    %67 = vmatpush1.msra.mxu0 %v40
    %68 = vmatprep.subr.mxu0 0.0
    %69 = vmatpush1.msra.mxu0 %v41
    %70 = vmatprep.subr.mxu0 0.0
    %71 = vmatpush1.msra.mxu0 %v42
    %72 = vmatprep.subr.mxu0 0.0
    %73 = vmatpush1.msra.mxu0 %v43
    %74 = vmatprep.subr.mxu0 0.0
    %75 = vmatpush1.msra.mxu0 %v44
    %76 = vmatprep.subr.mxu0 0.0
    %77 = vmatpush1.msra.mxu0 %v45
    %78 = vmatprep.subr.mxu0 0.0
    %79 = vmatpush1.msra.mxu0 %v46
    %80 = vmatprep.subr.mxu0 0.0
    %81 = vmatpush1.msra.mxu0 %v47
    %82 = vmatprep.subr.mxu0 0.0
    %83 = vmatpush1.msra.mxu0 %v48
    %84 = vmatprep.subr.mxu0 0.0
    %85 = vmatpush1.msra.mxu0 %v49
    %86 = vmatprep.subr.mxu0 0.0
    %87 = vmatpush1.msra.mxu0 %v50
    %88 = vmatprep.subr.mxu0 0.0
    %89 = vmatpush1.msra.mxu0 %v51
    %90 = vmatprep.subr.mxu0 0.0
    %91 = vmatpush1.msra.mxu0 %v52
    %92 = vmatprep.subr.mxu0 0.0
    %93 = vmatpush1.msra.mxu0 %v53
    %94 = vmatprep.subr.mxu0 0.0
    %95 = vmatpush1.msra.mxu0 %v54
    %96 = vmatprep.subr.mxu0 0.0
    %97 = vmatpush1.msra.mxu0 %v55
    %98 = vmatprep.subr.mxu0 0.0
    %99 = vmatpush1.msra.mxu0 %v56
    %100 = vmatprep.subr.mxu0 0.0
    %101 = vmatpush1.msra.mxu0 %v57
    %102 = vmatprep.subr.mxu0 0.0
    %103 = vmatpush1.msra.mxu0 %v58
    %104 = vmatprep.subr.mxu0 0.0
    %105 = vmatpush1.msra.mxu0 %v59
    %106 = vmatprep.subr.mxu0 0.0
    %107 = vmatpush1.msra.mxu0 %v60
    %108 = vmatprep.subr.mxu0 0.0
    %109 = vmatpush1.msra.mxu0 %v61
    %110 = vmatprep.subr.mxu0 0.0
    %111 = vmatpush1.msra.mxu0 0.0
    %112 = vmatprep.subr.mxu0 0.0
    %113 = vmatpush1.msra.mxu0 0.0
    %114 = vmatprep.subr.mxu0 0.0
    %115 = vmatpush1.msra.mxu0 0.0
    %116 = vmatprep.subr.mxu0 0.0
    %117 = vmatpush1.msra.mxu0 0.0
    %118 = vmatprep.subr.mxu0 0.0
    %119 = vmatpush1.msra.mxu0 0.0
    %120 = vmatprep.subr.mxu0 0.0
    %121 = vmatpush1.msra.mxu0 0.0
    %122 = vmatprep.subr.mxu0 0.0
    %123 = vmatpush1.msra.mxu0 0.0
    %124 = vmatprep.subr.mxu0 0.0
    %125 = vmatpush1.msra.mxu0 0.0
    %126 = vmatprep.subr.mxu0 0.0
    %127 = vmatpush1.msra.mxu0 0.0
    %128 = vmatprep.subr.mxu0 0.0
    %129 = vmatpush1.msra.mxu0 0.0
    %130 = vmatprep.mubr.f32.mxu0 %v64
    %131 = vmatmul.mubr.f32.gmra.mrb[0].mxu0 %v38
    %v132 = vpop.f32.mrb[0].mxu0
    %v133 = vadd.f32 0.0, %v132
    %v134 = vpop.f32.mrb[0].mxu0
    %135 = vdwg.mxu0
    %136 = vst [vmem:[#allocation7] sm:$0xff] %v133
    // Predicated region
    $region18: #{tpu_custom_call.1} parent=1 // pred_check
      _
    $region19: #{tpu_custom_call.1} parent=1 // pred_check_branch
      %138 = sbr.rel (0) target = $region21
    $region20: #{tpu_custom_call.1} parent=1 // pred_region
      %s140 = ssub.s32 128, 128
      %141 = vsyncadd [#allocation4], %s140
      %s143 = sshll.u32 [#allocation7], 4
      %s144 = int_to_ptr.vmem [resolvable:$true] %s143
      %146 = dma.vmem_to_hbm [thread:$0]  %s144, 128, %s2, [#allocation4]
    $region21: #{tpu_custom_call.1} parent=1 // pred_fallthru
      _
    // Predicated region
    $region22: #{tpu_custom_call.1} parent=1 // pred_check
      _
    $region23: #{tpu_custom_call.1} parent=1 // pred_check_branch
      %148 = sbr.rel (0) target = $region25
    $region24: #{tpu_custom_call.1} parent=1 // pred_region
      %149 = dma.done [#allocation4], 128
    $region25: #{tpu_custom_call.1} parent=1 // pred_fallthru
      _
    %150 = vsyncpa [#allocation3], 1
    %151 = vsyncpa [#allocation6], 1
    %152 = vsyncpa [#allocation4], 1

</llo_original>
